<compile_context>
chip_gen: v7x
topology: tpu7x:2x2x1
jax: 0.10.0
libtpu: 0.0.40
codegen_flags: <defaults>
</compile_context>

<pallas_src>
import functools

import jax
import jax.numpy as jnp
from jax.experimental import pallas as pl
from jax.experimental.pallas import tpu as pltpu


def _infonce_tile_kernel(qa_ref, qb_ref, akeys_ref, bkeys_ref,
                         lse2_ref, col_ref, *, inv_t):
    """One row tile: TILE_M rows of `a` and the matching TILE_M rows of `b`.

    Writes:
      lse2_ref (1, TILE_M, 1): log( rowsum(exp(cos_aa - 1/T)) - 1
                                    + rowsum(exp(cos_ab - 1/T)) ) per a-row.
      col_ref  (1, 1, B):      partial column sums of exp(cos_ab - 1/T) plus
                               partial column sums of exp(cos_bb - 1/T).  Since
                               cos_bb is exactly symmetric, their total over
                               all row tiles equals the full row sums that
                               logsumexp_1 needs.
    """
    it = jnp.float32(inv_t)

    qa = qa_ref[...]                       # (TILE_M, D)  MXU operand dtype
    qb = qb_ref[...]
    a_keys = akeys_ref[...]                # (D, B) resident key panel
    b_keys = bkeys_ref[...]

    def shifted_exp(q, keys):              # exp(q@keys / T - 1/T), f32 accumulate
        logits = jnp.dot(q, keys, preferred_element_type=jnp.float32)
        return jnp.exp(logits * it - it)

    # --- cos_ab: reused for BOTH the row sums (lse2) and column sums (lse1) --
    e_ab = shifted_exp(qa, b_keys)                        # (TILE_M, B)
    s2 = jnp.sum(e_ab, axis=1, keepdims=True)             # (TILE_M, 1)
    col = jnp.sum(e_ab, axis=0, keepdims=True)            # (1, B)

    # --- cos_aa: row sums only; the masked diagonal is exp(0) = 1 -----------
    e_aa = shifted_exp(qa, a_keys)
    s2 = s2 + (jnp.sum(e_aa, axis=1, keepdims=True) - 1.0)
    lse2_ref[...] = jnp.log(s2).reshape(1, s2.shape[0], 1)

    # --- cos_bb: symmetric, so accumulating its column sums over all row
    #     tiles yields the full (diag-included) row sums needed by lse1 -------
    e_bb = shifted_exp(qb, b_keys)
    col_ref[...] = (col + jnp.sum(e_bb, axis=0, keepdims=True)).reshape(
        1, 1, col.shape[1])


def _pick_tile_m(batch_size):
    # MXU-friendly first (256 fills the 2x256x256 MXU on v6e/v7x, 128 the
    # 4x128x128 on v5e); single full-batch tile for tiny / odd batches.
    for t in (256, 128, 64, 32, 16, 8):
        if t <= batch_size and batch_size % t == 0:
            return t
    return batch_size


def infonce_cosine(features, temperature=0.5, reg_coef=0.0, reg_radius=200.0,
                   use_bf16_matmul=True):
    """features: (2*batch, dim) float array -> scalar loss (float32)."""
    n, d = features.shape
    assert n % 2 == 0, "features must stack two augmented views along dim 0"
    B = n // 2
    inv_t = 1.0 / float(temperature)
    matmul_dtype = jnp.bfloat16 if use_bf16_matmul else jnp.float32

    # ---- O(B*D) prologue (fused XLA; done once, not once per grid step) ----
    feats = features.astype(jnp.float32)
    sq = jnp.sum(feats * feats, axis=1, keepdims=True)             # (2B, 1)
    if float(reg_coef) != 0.0:                                     # static branch
        diff = jnp.sqrt(sq) - jnp.float32(reg_radius)
        penalty = jnp.float32(reg_coef) * jnp.mean(diff * diff)
    else:
        penalty = jnp.float32(0.0)
    # F.normalize: x / max(||x||, 1e-12) == x * rsqrt(max(||x||^2, 1e-24))
    normed = feats * jax.lax.rsqrt(jnp.maximum(sq, jnp.float32(1e-24)))
    an, bn = normed[:B], normed[B:]
    # trace(a @ b.T)/T/B == sum(a*b)/T/B — no (B,B) work needed.
    tempered_alignment = jnp.sum(an * bn) * jnp.float32(inv_t) / jnp.float32(B)

    qa = an.astype(matmul_dtype)               # (B, D) query slabs (row-tiled)
    qb = bn.astype(matmul_dtype)
    a_keys = an.T.astype(matmul_dtype)         # (D, B) pre-transposed key panels
    b_keys = bn.T.astype(matmul_dtype)

    tile_m = _pick_tile_m(B)
    num_tiles = B // tile_m

    kernel = functools.partial(_infonce_tile_kernel, inv_t=inv_t)

    item = jnp.dtype(matmul_dtype).itemsize
    cost = pl.CostEstimate(
        flops=3 * 2 * B * B * d,                       # three Grams
        transcendentals=3 * B * B + B,                 # exps + per-row logs
        bytes_accessed=4 * B * d * item + (B + num_tiles * B) * 4,
    )
    try:
        vmem_cap = int(pltpu.get_tpu_info().vmem_capacity_bytes)
    except Exception:                                   # non-TPU trace fallback
        vmem_cap = 64 * 1024 * 1024
    vmem_est = (2 * 2 * tile_m * d * item               # double-buffered queries
                + 2 * 2 * d * B * item                  # resident key panels
                + 4 * tile_m * B * 4                    # live exp tiles
                + (2 << 20))
    vmem_limit = int(min(max(2 * vmem_est, 32 * 1024 * 1024),
                         int(vmem_cap * 0.75)))

    lse2_rows, col_parts = pl.pallas_call(
        kernel,
        grid=(num_tiles,),
        in_specs=[
            pl.BlockSpec((tile_m, d), lambda i: (i, 0)),   # a query tile
            pl.BlockSpec((tile_m, d), lambda i: (i, 0)),   # b query tile
            pl.BlockSpec((d, B), lambda i: (0, 0)),        # a keys (resident)
            pl.BlockSpec((d, B), lambda i: (0, 0)),        # b keys (resident)
        ],
        out_specs=[
            pl.BlockSpec((1, tile_m, 1), lambda i: (i, 0, 0)),
            pl.BlockSpec((1, 1, B), lambda i: (i, 0, 0)),
        ],
        out_shape=[
            jax.ShapeDtypeStruct((num_tiles, tile_m, 1), jnp.float32),
            jax.ShapeDtypeStruct((num_tiles, 1, B), jnp.float32),
        ],
        cost_estimate=cost,
        compiler_params=pltpu.CompilerParams(
            dimension_semantics=("parallel",),
            vmem_limit_bytes=vmem_limit),
    )(qa, qb, a_keys, b_keys)

    # ---- O(B) epilogue (XLA) ------------------------------------------------
    inv_t_f = jnp.float32(inv_t)
    logsumexp_2 = jnp.mean(lse2_rows) + inv_t_f
    s1 = jnp.sum(col_parts, axis=0).reshape(B) - 1.0    # drop cos_bb diagonal
    logsumexp_1 = jnp.mean(jnp.log(s1)) + inv_t_f
    raw_uniformity = logsumexp_1 + logsumexp_2
    return -(tempered_alignment - raw_uniformity * 0.5) + penalty


def _reference(features, temperature=0.5, reg_coef=0.0, reg_radius=200.0):
    """Pure-JAX replica of the PyTorch forward, for verification."""
    n = features.shape[0]
    bsz = n // 2
    feats = features.astype(jnp.float32)
    vecnorms = jnp.linalg.norm(feats, axis=1)
    penalty = reg_coef * jnp.mean((vecnorms - reg_radius) ** 2)
    normed = feats / jnp.maximum(
        jnp.linalg.norm(feats, axis=1, keepdims=True), 1e-12)
    a, b = normed[:bsz], normed[bsz:]
    cos_aa = a @ a.T / temperature
    cos_bb = b @ b.T / temperature
    cos_ab = a @ b.T / temperature
    tempered_alignment = jnp.trace(cos_ab) / bsz
    eye = jnp.eye(bsz, dtype=bool)
    cos_aa = jnp.where(eye, -jnp.inf, cos_aa)
    cos_bb = jnp.where(eye, -jnp.inf, cos_bb)
    lse1 = jnp.mean(jax.scipy.special.logsumexp(
        jnp.hstack((cos_ab.T, cos_bb)), axis=1))
    lse2 = jnp.mean(jax.scipy.special.logsumexp(
        jnp.hstack((cos_aa, cos_ab)), axis=1))
    raw_uniformity = lse1 + lse2
    return -(tempered_alignment - raw_uniformity / 2) + penalty


if __name__ == "__main__":
    key = jax.random.PRNGKey(0)
    batch, dim = 8, 32
    # features = torch.cat([view_a, view_b], dim=0) in the original usage
    features = jax.random.normal(key, (2 * batch, dim), dtype=jnp.float32)

    ref = _reference(features, 0.5, 0.0, 200.0)

    # Default path: bf16 MXU operands, f32 accumulation (small numeric drift).
    loss_bf16 = infonce_cosine(features, temperature=0.5, reg_coef=0.0,
                               reg_radius=200.0)
    jax.block_until_ready(loss_bf16)
    assert jnp.allclose(loss_bf16, ref, atol=2e-2, rtol=1e-3), (loss_bf16, ref)

    # Full-f32 matmul path: tight agreement with the reference.
    loss_f32 = infonce_cosine(features, temperature=0.5, reg_coef=0.0,
                              reg_radius=200.0, use_bf16_matmul=False)
    jax.block_until_ready(loss_f32)
    assert jnp.allclose(loss_f32, ref, atol=1e-4, rtol=1e-4), (loss_f32, ref)

    # Norm-penalty path (nonzero reg_coef).
    loss_reg = infonce_cosine(features, temperature=0.5, reg_coef=0.1,
                              reg_radius=200.0)
    jax.block_until_ready(loss_reg)
    ref_reg = _reference(features, 0.5, 0.1, 200.0)
    assert jnp.allclose(loss_reg, ref_reg, atol=1e-2, rtol=1e-4), (loss_reg, ref_reg)

    print("KERNEL_OK")
</pallas_src>

<mosaic_0001>
module attributes {stable_mosaic.version = 11 : i64} {
  func.func @_infonce_tile_kernel(%arg0: i32, %arg1: memref<8x32xbf16, #tpu.memory_space<vmem>>, %arg2: memref<8x32xbf16, #tpu.memory_space<vmem>>, %arg3: memref<32x8xbf16, #tpu.memory_space<vmem>>, %arg4: memref<32x8xbf16, #tpu.memory_space<vmem>>, %arg5: memref<1x8x1xf32, #tpu.memory_space<vmem>>, %arg6: memref<1x1x8xf32, #tpu.memory_space<vmem>>) attributes {dimension_semantics = [#tpu.dimension_semantics<parallel>], iteration_bounds = array<i64: 1>, scalar_prefetch = 0 : i64, scratch_operands = 0 : i64, tpu.core_type = #tpu.core_type<tc>, window_params = [{transform_indices = @transform_0, window_bounds = array<i64: 8, 32>}, {transform_indices = @transform_1, window_bounds = array<i64: 8, 32>}, {pipeline_mode = #tpu.pipeline_mode<synchronous>, transform_indices = @transform_2, window_bounds = array<i64: 32, 8>}, {pipeline_mode = #tpu.pipeline_mode<synchronous>, transform_indices = @transform_3, window_bounds = array<i64: 32, 8>}, {transform_indices = @transform_4, window_bounds = array<i64: 1, 8, 1>}, {transform_indices = @transform_5, window_bounds = array<i64: 1, 1, 8>}]} {
    %c0 = arith.constant 0 : index
    %c0_0 = arith.constant 0 : index
    %0 = vector.load %arg1[%c0, %c0_0] : memref<8x32xbf16, #tpu.memory_space<vmem>>, vector<8x32xbf16>
    %c0_1 = arith.constant 0 : index
    %c0_2 = arith.constant 0 : index
    %1 = vector.load %arg2[%c0_1, %c0_2] : memref<8x32xbf16, #tpu.memory_space<vmem>>, vector<8x32xbf16>
    %c0_3 = arith.constant 0 : index
    %c0_4 = arith.constant 0 : index
    %2 = vector.load %arg3[%c0_3, %c0_4] : memref<32x8xbf16, #tpu.memory_space<vmem>>, vector<32x8xbf16>
    %c0_5 = arith.constant 0 : index
    %c0_6 = arith.constant 0 : index
    %3 = vector.load %arg4[%c0_5, %c0_6] : memref<32x8xbf16, #tpu.memory_space<vmem>>, vector<32x8xbf16>
    %cst = arith.constant dense<0.000000e+00> : vector<8x8xf32>
    %4 = tpu.matmul %0, %3, %cst {dimension_numbers = #tpu.dot_dimension_numbers<[1], [0], [0], [1], [0, 0, 1, 1], [], []>} : vector<8x32xbf16>, vector<32x8xbf16>, vector<8x8xf32> -> vector<8x8xf32>
    %cst_7 = arith.constant 2.000000e+00 : f32
    %5 = vector.broadcast %cst_7 : f32 to vector<8x8xf32>
    %6 = arith.mulf %4, %5 : vector<8x8xf32>
    %cst_8 = arith.constant 2.000000e+00 : f32
    %7 = vector.broadcast %cst_8 : f32 to vector<8x8xf32>
    %8 = arith.subf %6, %7 : vector<8x8xf32>
    %9 = math.exp %8 : vector<8x8xf32>
    %cst_9 = arith.constant dense<0.000000e+00> : vector<8xf32>
    %10 = vector.multi_reduction <add>, %9, %cst_9 [1] : vector<8x8xf32> to vector<8xf32>
    %11 = vector.shape_cast %10 : vector<8xf32> to vector<8x1xf32>
    %cst_10 = arith.constant dense<0.000000e+00> : vector<8xf32>
    %12 = vector.multi_reduction <add>, %9, %cst_10 [0] : vector<8x8xf32> to vector<8xf32>
    %13 = vector.shape_cast %12 : vector<8xf32> to vector<1x8xf32>
    %cst_11 = arith.constant dense<0.000000e+00> : vector<8x8xf32>
    %14 = tpu.matmul %0, %2, %cst_11 {dimension_numbers = #tpu.dot_dimension_numbers<[1], [0], [0], [1], [0, 0, 1, 1], [], []>} : vector<8x32xbf16>, vector<32x8xbf16>, vector<8x8xf32> -> vector<8x8xf32>
    %cst_12 = arith.constant 2.000000e+00 : f32
    %15 = vector.broadcast %cst_12 : f32 to vector<8x8xf32>
    %16 = arith.mulf %14, %15 : vector<8x8xf32>
    %cst_13 = arith.constant 2.000000e+00 : f32
    %17 = vector.broadcast %cst_13 : f32 to vector<8x8xf32>
    %18 = arith.subf %16, %17 : vector<8x8xf32>
    %19 = math.exp %18 : vector<8x8xf32>
    %cst_14 = arith.constant dense<0.000000e+00> : vector<8xf32>
    %20 = vector.multi_reduction <add>, %19, %cst_14 [1] : vector<8x8xf32> to vector<8xf32>
    %21 = vector.shape_cast %20 : vector<8xf32> to vector<8x1xf32>
    %cst_15 = arith.constant 1.000000e+00 : f32
    %22 = vector.broadcast %cst_15 : f32 to vector<8x1xf32>
    %23 = arith.subf %21, %22 : vector<8x1xf32>
    %24 = arith.addf %11, %23 : vector<8x1xf32>
    %25 = math.log %24 : vector<8x1xf32>
    %26 = vector.shape_cast %25 : vector<8x1xf32> to vector<1x8x1xf32>
    %c0_16 = arith.constant 0 : index
    %c0_17 = arith.constant 0 : index
    %c0_18 = arith.constant 0 : index
    %27 = vector.load %arg5[%c0_16, %c0_17, %c0_18] : memref<1x8x1xf32, #tpu.memory_space<vmem>>, vector<1x8x1xf32>
    tpu.vector_store %arg5[%c0_16, %c0_17, %c0_18], %26 {strides = array<i32>} : memref<1x8x1xf32, #tpu.memory_space<vmem>>, vector<1x8x1xf32>,
    %cst_19 = arith.constant dense<0.000000e+00> : vector<8x8xf32>
    %28 = tpu.matmul %1, %3, %cst_19 {dimension_numbers = #tpu.dot_dimension_numbers<[1], [0], [0], [1], [0, 0, 1, 1], [], []>} : vector<8x32xbf16>, vector<32x8xbf16>, vector<8x8xf32> -> vector<8x8xf32>
    %cst_20 = arith.constant 2.000000e+00 : f32
    %29 = vector.broadcast %cst_20 : f32 to vector<8x8xf32>
    %30 = arith.mulf %28, %29 : vector<8x8xf32>
    %cst_21 = arith.constant 2.000000e+00 : f32
    %31 = vector.broadcast %cst_21 : f32 to vector<8x8xf32>
    %32 = arith.subf %30, %31 : vector<8x8xf32>
    %33 = math.exp %32 : vector<8x8xf32>
    %cst_22 = arith.constant dense<0.000000e+00> : vector<8xf32>
    %34 = vector.multi_reduction <add>, %33, %cst_22 [0] : vector<8x8xf32> to vector<8xf32>
    %35 = vector.shape_cast %34 : vector<8xf32> to vector<1x8xf32>
    %36 = arith.addf %13, %35 : vector<1x8xf32>
    %37 = vector.shape_cast %36 : vector<1x8xf32> to vector<1x1x8xf32>
    %c0_23 = arith.constant 0 : index
    %c0_24 = arith.constant 0 : index
    %c0_25 = arith.constant 0 : index
    %38 = vector.load %arg6[%c0_23, %c0_24, %c0_25] : memref<1x1x8xf32, #tpu.memory_space<vmem>>, vector<1x1x8xf32>
    tpu.vector_store %arg6[%c0_23, %c0_24, %c0_25], %37 {strides = array<i32>} : memref<1x1x8xf32, #tpu.memory_space<vmem>>, vector<1x1x8xf32>,
    return
  }
  func.func @transform_0(%arg0: i32) -> (i32, i32) {
    %c0_i32 = arith.constant 0 : i32
    %c0_i32_0 = arith.constant 0 : i32
    return %arg0, %c0_i32 : i32, i32
  }
  func.func @transform_1(%arg0: i32) -> (i32, i32) {
    %c0_i32 = arith.constant 0 : i32
    %c0_i32_0 = arith.constant 0 : i32
    return %arg0, %c0_i32 : i32, i32
  }
  func.func @transform_2(%arg0: i32) -> (i32, i32) {
    %c0_i32 = arith.constant 0 : i32
    %c0_i32_0 = arith.constant 0 : i32
    %c0_i32_1 = arith.constant 0 : i32
    return %c0_i32, %c0_i32_0 : i32, i32
  }
  func.func @transform_3(%arg0: i32) -> (i32, i32) {
    %c0_i32 = arith.constant 0 : i32
    %c0_i32_0 = arith.constant 0 : i32
    %c0_i32_1 = arith.constant 0 : i32
    return %c0_i32, %c0_i32_0 : i32, i32
  }
  func.func @transform_4(%arg0: i32) -> (i32, i32, i32) {
    %c0_i32 = arith.constant 0 : i32
    %c0_i32_0 = arith.constant 0 : i32
    %c0_i32_1 = arith.constant 0 : i32
    return %arg0, %c0_i32, %c0_i32_0 : i32, i32, i32
  }
  func.func @transform_5(%arg0: i32) -> (i32, i32, i32) {
    %c0_i32 = arith.constant 0 : i32
    %c0_i32_0 = arith.constant 0 : i32
    %c0_i32_1 = arith.constant 0 : i32
    return %arg0, %c0_i32, %c0_i32_0 : i32, i32, i32
  }
}

</mosaic_0001>

<llo_original>
// kernel: tpu_custom_call.1
$region0: #{tpu_custom_call.1}
  #allocation0 [shape = 'u32[]', space=smem, size = 0x4, offset = 0x4, fixed_abs, tag = 'smem constant byte address 0x4 - core index']
  #allocation1 [shape = 'u32[144,128]{1,0:T(1,128)}', space=vmem, size = 0x12000, scoped, tag = 'internal scratch']
  %s0 = inlined_call_operand.vmem [shape: bf16[8,32], index: 0, kind: input, shape index: {}]
  %s1 = inlined_call_operand.vmem [shape: bf16[8,32], index: 1, kind: input, shape index: {}]
  %s2 = inlined_call_operand.vmem [shape: bf16[32,8], index: 2, kind: input, shape index: {}]
  %s3 = inlined_call_operand.vmem [shape: bf16[32,8], index: 3, kind: input, shape index: {}]
  %s4 = inlined_call_operand.vmem [shape: f32[1,8,1], index: 4, kind: output, shape index: {0}]
  %s5 = inlined_call_operand.hbm [shape: f32[1,1,8], index: 5, kind: output, shape index: {1}]
  %6 = xla_tuple %s4, %s5
  %s7 = sld [smem:[#allocation0]]
  $region34: #{tpu_custom_call.1} parent=0
    _
  %s9 = ssub.s32 1, %s7
  %s10 = scalar_select 0, %s9, %s7
  $region1: #{tpu_custom_call.1} parent=0
    #allocation2 [shape = 'u8[512]{0}', space=vmem, size = 0x400, scoped, tag = 'output window, operand 1, single buffered']
    #allocation3 [shape = 's32[1]{0}', space=sflag, size = 0x4, scoped, tag = 'scoped memory for tpu_custom_call.1']
    %11 = vsyncpa [#allocation3], 0
    // Predicated region
    $region2: #{tpu_custom_call.1} parent=1 // pred_check
      _
    $region3: #{tpu_custom_call.1} parent=1 // pred_check_branch
      %13 = sbr.rel (0) target = $region5
    $region4: #{tpu_custom_call.1} parent=1 // pred_region
      _
    $region5: #{tpu_custom_call.1} parent=1 // pred_fallthru
      _
    // Predicated region
    $region6: #{tpu_custom_call.1} parent=1 // pred_check
      _
    $region7: #{tpu_custom_call.1} parent=1 // pred_check_branch
      %15 = sbr.rel (0) target = $region9
    $region8: #{tpu_custom_call.1} parent=1 // pred_region
      _
    $region9: #{tpu_custom_call.1} parent=1 // pred_fallthru
      _
    // Predicated region
    $region10: #{tpu_custom_call.1} parent=1 // pred_check
      _
    $region11: #{tpu_custom_call.1} parent=1 // pred_check_branch
      %17 = sbr.rel (0) target = $region13
    $region12: #{tpu_custom_call.1} parent=1 // pred_region
      _
    $region13: #{tpu_custom_call.1} parent=1 // pred_fallthru
      _
    // Predicated region
    $region14: #{tpu_custom_call.1} parent=1 // pred_check
      _
    $region15: #{tpu_custom_call.1} parent=1 // pred_check_branch
      %19 = sbr.rel (0) target = $region17
    $region16: #{tpu_custom_call.1} parent=1 // pred_region
      _
    $region17: #{tpu_custom_call.1} parent=1 // pred_fallthru
      _
    %v21 = vld [vmem:[%s0] sm:$0xf]
    %v22 = vld [vmem:[%s1] sm:$0xf]
    %v23 = vld [vmem:[%s2] sm:$0xf]
    %v24 = vld [vmem:[%s2 + $0x4] sm:$0xf]
    %v25 = vld [vmem:[%s2 + $0x8] sm:$0xf]
    %v26 = vld [vmem:[%s2 + $0xc] sm:$0xf]
    %v27 = vld [vmem:[%s3] sm:$0xf]
    %v28 = vld [vmem:[%s3 + $0x4] sm:$0xf]
    %v29 = vld [vmem:[%s3 + $0x8] sm:$0xf]
    %v30 = vld [vmem:[%s3 + $0xc] sm:$0xf]
    %v35 = vunpack.c.l.b16 %v27
    %v36 = vunpack.c.l.b16 %v28
    %v37 = vunpack.c.l.b16 %v29
    %v38 = vunpack.c.l.b16 %v30
    %v39 = vpack.c.b16 %v36, %v35
    %v40 = vpack.c.b16 %v38, %v37
    %vm43 = vcmask 261120
    %v45 = vsel %vm43, %v21, 0
    %47 = vmatprep.subr.bf16.mxu0 0
    %48 = vmatpush1.bf16.msra.mxu0 %v39
    %49 = vmatprep.subr.bf16.mxu0 0
    %50 = vmatpush1.bf16.msra.mxu0 %v40
    %51 = vmatprep.subr.bf16.mxu0 0
    %52 = vmatpush1.bf16.msra.mxu0 0
    %53 = vmatprep.subr.bf16.mxu0 0
    %54 = vmatpush1.bf16.msra.mxu0 0
    %55 = vmatprep.subr.bf16.mxu0 0
    %56 = vmatpush1.bf16.msra.mxu0 0
    %57 = vmatprep.subr.bf16.mxu0 0
    %58 = vmatpush1.bf16.msra.mxu0 0
    %59 = vmatprep.subr.bf16.mxu0 0
    %60 = vmatpush1.bf16.msra.mxu0 0
    %61 = vmatprep.subr.bf16.mxu0 0
    %62 = vmatpush1.bf16.msra.mxu0 0
    %63 = vmatprep.subr.bf16.mxu0 0
    %64 = vmatpush1.bf16.msra.mxu0 0
    %65 = vmatprep.subr.bf16.mxu0 0
    %66 = vmatpush1.bf16.msra.mxu0 0
    %67 = vmatprep.subr.bf16.mxu0 0
    %68 = vmatpush1.bf16.msra.mxu0 0
    %69 = vmatprep.subr.bf16.mxu0 0
    %70 = vmatpush1.bf16.msra.mxu0 0
    %71 = vmatprep.subr.bf16.mxu0 0
    %72 = vmatpush1.bf16.msra.mxu0 0
    %73 = vmatprep.subr.bf16.mxu0 0
    %74 = vmatpush1.bf16.msra.mxu0 0
    %75 = vmatprep.subr.bf16.mxu0 0
    %76 = vmatpush1.bf16.msra.mxu0 0
    %77 = vmatprep.subr.bf16.mxu0 0
    %78 = vmatpush1.bf16.msra.mxu0 0
    %79 = vmatprep.mubr.bf16.mxu0 0
    %80 = vmatmul.mubr.bf16.gmra.mrb[0].mxu0 %v45
    %v81 = vpop.f32.mrb[0].mxu0
    %v82 = vadd.f32 0.0, %v81
    %v83 = vpop.f32.mrb[0].mxu0
    %v84 = vpop.f32.mrb[0].mxu0
    %v85 = vpop.f32.mrb[0].mxu0
    %86 = vdwg.mxu0
    %v87 = vmul.f32 %v82, 2.0
    %v88 = vsub.f32 %v87, 2.0
    %v89 = vmul.f32 %v88, 1.442695
    %v90 = vpow.pop %v89
    %vm91 = vcmask 64512
    %v92 = vsel %vm91, %v90, 0.0
    %93 = vadd.xlane.f32.xlu0 %v92
    %v94 = vpop.xlane.xlu0 %93
    %v95 = vrot.slane %v92, 4
    %v96 = vadd.f32 %v92, %v95
    %v97 = vrot.slane %v96, 2
    %v98 = vadd.f32 %v96, %v97
    %v99 = vrot.slane %v98, 1
    %v100 = vadd.f32 %v98, %v99
    %v105 = vunpack.c.l.b16 %v23
    %v106 = vunpack.c.l.b16 %v24
    %v107 = vunpack.c.l.b16 %v25
    %v108 = vunpack.c.l.b16 %v26
    %v109 = vpack.c.b16 %v106, %v105
    %v110 = vpack.c.b16 %v108, %v107
    %113 = vmatprep.subr.bf16.mxu0 0
    %114 = vmatpush1.bf16.msra.mxu0 %v109
    %115 = vmatprep.subr.bf16.mxu0 0
    %116 = vmatpush1.bf16.msra.mxu0 %v110
    %117 = vmatprep.subr.bf16.mxu0 0
    %118 = vmatpush1.bf16.msra.mxu0 0
    %119 = vmatprep.subr.bf16.mxu0 0
    %120 = vmatpush1.bf16.msra.mxu0 0
    %121 = vmatprep.subr.bf16.mxu0 0
    %122 = vmatpush1.bf16.msra.mxu0 0
    %123 = vmatprep.subr.bf16.mxu0 0
    %124 = vmatpush1.bf16.msra.mxu0 0
    %125 = vmatprep.subr.bf16.mxu0 0
    %126 = vmatpush1.bf16.msra.mxu0 0
    %127 = vmatprep.subr.bf16.mxu0 0
    %128 = vmatpush1.bf16.msra.mxu0 0
    %129 = vmatprep.subr.bf16.mxu0 0
    %130 = vmatpush1.bf16.msra.mxu0 0
    %131 = vmatprep.subr.bf16.mxu0 0
    %132 = vmatpush1.bf16.msra.mxu0 0
    %133 = vmatprep.subr.bf16.mxu0 0
    %134 = vmatpush1.bf16.msra.mxu0 0
    %135 = vmatprep.subr.bf16.mxu0 0
    %136 = vmatpush1.bf16.msra.mxu0 0
    %137 = vmatprep.subr.bf16.mxu0 0
    %138 = vmatpush1.bf16.msra.mxu0 0
    %139 = vmatprep.subr.bf16.mxu0 0
    %140 = vmatpush1.bf16.msra.mxu0 0
    %141 = vmatprep.subr.bf16.mxu0 0
    %142 = vmatpush1.bf16.msra.mxu0 0
    %143 = vmatprep.subr.bf16.mxu0 0
    %144 = vmatpush1.bf16.msra.mxu0 0
    %145 = vmatprep.mubr.bf16.mxu0 0
    %146 = vmatmul.mubr.bf16.gmra.mrb[0].mxu0 %v45
    %v147 = vpop.f32.mrb[0].mxu0
    %v148 = vadd.f32 0.0, %v147
    %v149 = vpop.f32.mrb[0].mxu0
    %v150 = vpop.f32.mrb[0].mxu0
    %v151 = vpop.f32.mrb[0].mxu0
    %152 = vdwg.mxu0
    %v153 = vmul.f32 %v148, 2.0
    %v154 = vsub.f32 %v153, 2.0
    %v155 = vmul.f32 %v154, 1.442695
    %v156 = vpow.pop %v155
    %v157 = vsel %vm91, %v156, 0.0
    %158 = vadd.xlane.f32.xlu0 %v157
    %v159 = vpop.xlane.xlu0 %158
    %v160 = vsub.f32 %v159, 1.0
    %v161 = vadd.f32 %v94, %v160
    %v162 = vlog2.pop %v161
    %v163 = vmul.f32 %v162, 0.6931472
    %vm164 = vcmask 7168
    %165 = vst.msk [vmem:[%s4] sm:$0xff] %vm164, %v163
    %v167 = vsel %vm43, %v22, 0
    %169 = vmatprep.subr.bf16.mxu0 0
    %170 = vmatpush1.bf16.msra.mxu0 %v39
    %171 = vmatprep.subr.bf16.mxu0 0
    %172 = vmatpush1.bf16.msra.mxu0 %v40
    %173 = vmatprep.subr.bf16.mxu0 0
    %174 = vmatpush1.bf16.msra.mxu0 0
    %175 = vmatprep.subr.bf16.mxu0 0
    %176 = vmatpush1.bf16.msra.mxu0 0
    %177 = vmatprep.subr.bf16.mxu0 0
    %178 = vmatpush1.bf16.msra.mxu0 0
    %179 = vmatprep.subr.bf16.mxu0 0
    %180 = vmatpush1.bf16.msra.mxu0 0
    %181 = vmatprep.subr.bf16.mxu0 0
    %182 = vmatpush1.bf16.msra.mxu0 0
    %183 = vmatprep.subr.bf16.mxu0 0
    %184 = vmatpush1.bf16.msra.mxu0 0
    %185 = vmatprep.subr.bf16.mxu0 0
    %186 = vmatpush1.bf16.msra.mxu0 0
    %187 = vmatprep.subr.bf16.mxu0 0
    %188 = vmatpush1.bf16.msra.mxu0 0
    %189 = vmatprep.subr.bf16.mxu0 0
    %190 = vmatpush1.bf16.msra.mxu0 0
    %191 = vmatprep.subr.bf16.mxu0 0
    %192 = vmatpush1.bf16.msra.mxu0 0
    %193 = vmatprep.subr.bf16.mxu0 0
    %194 = vmatpush1.bf16.msra.mxu0 0
    %195 = vmatprep.subr.bf16.mxu0 0
    %196 = vmatpush1.bf16.msra.mxu0 0
    %197 = vmatprep.subr.bf16.mxu0 0
    %198 = vmatpush1.bf16.msra.mxu0 0
    %199 = vmatprep.subr.bf16.mxu0 0
    %200 = vmatpush1.bf16.msra.mxu0 0
    %201 = vmatprep.mubr.bf16.mxu0 0
    %202 = vmatmul.mubr.bf16.gmra.mrb[0].mxu0 %v167
    %v203 = vpop.f32.mrb[0].mxu0
    %v204 = vadd.f32 0.0, %v203
    %v205 = vpop.f32.mrb[0].mxu0
    %v206 = vpop.f32.mrb[0].mxu0
    %v207 = vpop.f32.mrb[0].mxu0
    %208 = vdwg.mxu0
    %v209 = vmul.f32 %v204, 2.0
    %v210 = vsub.f32 %v209, 2.0
    %v211 = vmul.f32 %v210, 1.442695
    %v212 = vpow.pop %v211
    %v213 = vsel %vm91, %v212, 0.0
    %v214 = vrot.slane %v213, 4
    %v215 = vadd.f32 %v213, %v214
    %v216 = vrot.slane %v215, 2
    %v217 = vadd.f32 %v215, %v216
    %v218 = vrot.slane %v217, 1
    %v219 = vadd.f32 %v217, %v218
    %v220 = vadd.f32 %v100, %v219
    %vm221 = vcmask 57344
    %222 = vst.msk [vmem:[#allocation2] sm:$0x1] %vm221, %v220
    // Predicated region
    $region18: #{tpu_custom_call.1} parent=1 // pred_check
      _
    $region19: #{tpu_custom_call.1} parent=1 // pred_check_branch
      %224 = sbr.rel (0) target = $region21
    $region20: #{tpu_custom_call.1} parent=1 // pred_region
      _
    $region21: #{tpu_custom_call.1} parent=1 // pred_fallthru
      _
    // Predicated region
    $region22: #{tpu_custom_call.1} parent=1 // pred_check
      _
    $region23: #{tpu_custom_call.1} parent=1 // pred_check_branch
      %226 = sbr.rel (0) target = $region25
    $region24: #{tpu_custom_call.1} parent=1 // pred_region
      %s228 = ssub.s32 16, 16
      %229 = vsyncadd [#allocation3], %s228
      %s231 = sshll.u32 [#allocation2], 4
      %s232 = int_to_ptr.vmem [resolvable:$true] %s231
      %234 = dma.vmem_to_hbm [thread:$0]  %s232, 16, %s5, [#allocation3]
    $region25: #{tpu_custom_call.1} parent=1 // pred_fallthru
      _
    // Predicated region
    $region26: #{tpu_custom_call.1} parent=1 // pred_check
      _
    $region27: #{tpu_custom_call.1} parent=1 // pred_check_branch
      %236 = sbr.rel (0) target = $region29
    $region28: #{tpu_custom_call.1} parent=1 // pred_region
      _
    $region29: #{tpu_custom_call.1} parent=1 // pred_fallthru
      _
    // Predicated region
    $region30: #{tpu_custom_call.1} parent=1 // pred_check
      _
    $region31: #{tpu_custom_call.1} parent=1 // pred_check_branch
      %238 = sbr.rel (0) target = $region33
    $region32: #{tpu_custom_call.1} parent=1 // pred_region
      %239 = dma.done [#allocation3], 16
    $region33: #{tpu_custom_call.1} parent=1 // pred_fallthru
      _
    %240 = vsyncpa [#allocation3], 1

</llo_original>
